<compile_context>
chip_gen: v7x
topology: tpu7x:2x2x1
jax: 0.10.0
libtpu: 0.0.40
codegen_flags: <defaults>
</compile_context>

<pallas_src>
import jax
import jax.numpy as jnp
from jax.experimental import pallas as pl
from jax.experimental.pallas import tpu as pltpu


def _round_up(x, m):
    return ((x + m - 1) // m) * m


def _qnet_kernel(s_ref, a_ref, w1s_ref, w1a_ref, b1_ref, w2_ref, b2_ref,
                 w3_ref, b3_ref, q_ref):
    # Upcast (possibly bf16-stored) params once; all elementwise math is f32
    # (v5e-safe), MXU accumulation is f32.
    w1s = w1s_ref[...].astype(jnp.float32)
    w1a = w1a_ref[...].astype(jnp.float32)
    w2 = w2_ref[...].astype(jnp.float32)
    w3 = w3_ref[...].astype(jnp.float32)
    b1 = b1_ref[...].astype(jnp.float32)
    b2 = b2_ref[...].astype(jnp.float32)
    b3 = b3_ref[...].astype(jnp.float32)

    # Layer 1: split matmul replaces the state/action concat.
    h1 = (jnp.dot(s_ref[...], w1s, preferred_element_type=jnp.float32)
          + jnp.dot(a_ref[...], w1a, preferred_element_type=jnp.float32)
          + b1)
    h1 = jnp.maximum(h1, 0.0)

    # Layer 2: block-diagonal fused weight keeps the two heads independent.
    h2 = jnp.dot(h1, w2, preferred_element_type=jnp.float32) + b2
    h2 = jnp.maximum(h2, 0.0)

    # Layer 3: (2E, 2) head -> column 0 is q1, column 1 is q2.
    q = jnp.dot(h2, w3, preferred_element_type=jnp.float32) + b3
    q_ref[...] = q.astype(q_ref.dtype)


def _vmem_limit_bytes(bt, ds, da, packed):
    """Rough VMEM budget: lane/sublane-padded, double-buffered activations."""
    def padded(shape, itemsize):
        r, c = shape
        return _round_up(r, 8) * _round_up(c, 128) * itemsize

    e2 = packed["w2"].shape[0]
    need = 2 * (padded((bt, ds), 4) + padded((bt, da), 4) + padded((bt, 2), 4))
    for v in packed.values():
        need += padded(v.shape, v.dtype.itemsize)
    need += 2 * padded((bt, e2), 4)      # h1 / h2 temporaries
    need += 4 << 20                      # headroom
    # >=16 MiB (v5e default), <=48 MiB (safe under v7x's 64 MiB physical VMEM).
    return int(min(max(need, 16 << 20), 48 << 20))


def qnetwork_forward(state, action, packed, *, block_batch=512):
    """state: (B, state_dim), action: (B, action_dim) -> (q1, q2), each (B, 1)."""
    b, ds = state.shape
    da = action.shape[1]
    e2 = packed["w2"].shape[0]            # fused hidden width = 2 * emb_size

    # Batch tile: multiple of 8 (f32 sublane); pad the batch to a tile multiple.
    bt = _round_up(min(block_batch, _round_up(b, 8)), 8)
    bp = _round_up(b, bt)
    if bp != b:
        state = jnp.pad(state, ((0, bp - b), (0, 0)))
        action = jnp.pad(action, ((0, bp - b), (0, 0)))
    grid = (bp // bt,)

    def resident(x):                      # full-array block, stays VMEM-resident
        return pl.BlockSpec(x.shape, lambda i: (0, 0))

    flops = 2 * bp * (ds * e2 + da * e2 + e2 * e2 + e2 * 2)
    bytes_accessed = (bp * (ds + da + 2) * 4
                      + sum(int(v.size) * v.dtype.itemsize
                            for v in packed.values()))
    cost = pl.CostEstimate(flops=flops, transcendentals=0,
                           bytes_accessed=bytes_accessed)

    q = pl.pallas_call(
        _qnet_kernel,
        out_shape=jax.ShapeDtypeStruct((bp, 2), jnp.float32),
        grid=grid,
        in_specs=[
            pl.BlockSpec((bt, ds), lambda i: (i, 0)),   # state tile
            pl.BlockSpec((bt, da), lambda i: (i, 0)),   # action tile
            resident(packed["w1_state"]),
            resident(packed["w1_action"]),
            resident(packed["b1"]),
            resident(packed["w2"]),
            resident(packed["b2"]),
            resident(packed["w3"]),
            resident(packed["b3"]),
        ],
        out_specs=pl.BlockSpec((bt, 2), lambda i: (i, 0)),
        compiler_params=pltpu.CompilerParams(
            dimension_semantics=("parallel",),
            vmem_limit_bytes=_vmem_limit_bytes(bt, ds, da, packed),
        ),
        cost_estimate=cost,
    )(state, action, packed["w1_state"], packed["w1_action"], packed["b1"],
      packed["w2"], packed["b2"], packed["w3"], packed["b3"])

    return q[:b, 0:1], q[:b, 1:2]


def init_params(key, state_dim, action_dim, emb_size):
    """Per-layer params mirroring nn.Linear (stored transposed: (in, out)), f32."""
    d = state_dim + action_dim
    keys = jax.random.split(key, 12)

    def lin(kw, kb, fan_in, fan_out):
        bound = 1.0 / jnp.sqrt(fan_in)
        w = jax.random.uniform(kw, (fan_in, fan_out), jnp.float32, -bound, bound)
        bias = jax.random.uniform(kb, (fan_out,), jnp.float32, -bound, bound)
        return w, bias

    raw = {}
    for head, off in (("a", 0), ("b", 6)):
        w1, b1 = lin(keys[off + 0], keys[off + 1], d, emb_size)
        w2, b2 = lin(keys[off + 2], keys[off + 3], emb_size, emb_size)
        w3, b3 = lin(keys[off + 4], keys[off + 5], emb_size, 1)
        raw.update({f"w1{head}": w1, f"b1{head}": b1,
                    f"w2{head}": w2, f"b2{head}": b2,
                    f"w3{head}": w3, f"b3{head}": b3})
    return raw


def pack_params(raw, state_dim, weight_dtype=jnp.bfloat16):
    """Fuse the two Q heads for the kernel.

    Head q1 occupies columns [:E], q2 columns [E:2E] of every layer; layer 2
    is block-diagonal so the heads stay independent; layer 3 maps to a
    (2E, 2) matrix whose two columns are the two Q outputs.  Layer-1 weights
    are split into state/action row blocks so the kernel never needs the
    concatenated input.  Weights stored in `weight_dtype`; biases stay f32.
    """
    e = raw["w1a"].shape[1]
    w1 = jnp.concatenate([raw["w1a"], raw["w1b"]], axis=1)            # (D, 2E)
    zeros_ee = jnp.zeros((e, e), jnp.float32)
    zeros_e1 = jnp.zeros((e, 1), jnp.float32)
    w2 = jnp.block([[raw["w2a"], zeros_ee], [zeros_ee, raw["w2b"]]])  # (2E, 2E)
    w3 = jnp.block([[raw["w3a"], zeros_e1], [zeros_e1, raw["w3b"]]])  # (2E, 2)
    cast = lambda x: x.astype(weight_dtype)
    return dict(
        w1_state=cast(w1[:state_dim]),
        w1_action=cast(w1[state_dim:]),
        b1=jnp.concatenate([raw["b1a"], raw["b1b"]])[None, :],
        w2=cast(w2),
        b2=jnp.concatenate([raw["b2a"], raw["b2b"]])[None, :],
        w3=cast(w3),
        b3=jnp.concatenate([raw["b3a"], raw["b3b"]])[None, :],
    )


if __name__ == "__main__":
    key = jax.random.PRNGKey(0)
    k_state, k_action, k_params = jax.random.split(key, 3)

    batch = 8
    state_dim = 12
    action_dim = 4
    emb_size = 32

    state = jax.random.normal(k_state, (batch, state_dim), jnp.float32)
    action = jax.random.normal(k_action, (batch, action_dim), jnp.float32)

    raw = init_params(k_params, state_dim, action_dim, emb_size)
    packed = pack_params(raw, state_dim, weight_dtype=jnp.bfloat16)

    fwd = jax.jit(qnetwork_forward, static_argnames=("block_batch",))
    q1, q2 = fwd(state, action, packed)
    jax.block_until_ready((q1, q2))
    assert q1.shape == (batch, 1) and q2.shape == (batch, 1)

    # Reference 1: identical math (same bf16-stored fused weights, f32 compute).
    p32 = {k: v.astype(jnp.float32) for k, v in packed.items()}

    def fused_ref(s, a):
        h1 = jnp.maximum(s @ p32["w1_state"] + a @ p32["w1_action"] + p32["b1"], 0.0)
        h2 = jnp.maximum(h1 @ p32["w2"] + p32["b2"], 0.0)
        return h2 @ p32["w3"] + p32["b3"]

    qr = fused_ref(state, action)
    assert jnp.allclose(q1, qr[:, 0:1], atol=2e-3, rtol=2e-3)
    assert jnp.allclose(q2, qr[:, 1:2], atol=2e-3, rtol=2e-3)

    # Reference 2: original (unfused, f32) twin-Q MLP; loose tolerance because
    # the kernel stores its weights in bf16.
    sa = jnp.concatenate([state, action], axis=-1)

    def head_ref(suf):
        h = jnp.maximum(sa @ raw[f"w1{suf}"] + raw[f"b1{suf}"], 0.0)
        h = jnp.maximum(h @ raw[f"w2{suf}"] + raw[f"b2{suf}"], 0.0)
        return h @ raw[f"w3{suf}"] + raw[f"b3{suf}"]

    assert jnp.allclose(q1, head_ref("a"), atol=6e-2, rtol=6e-2)
    assert jnp.allclose(q2, head_ref("b"), atol=6e-2, rtol=6e-2)

    # Exercise the batch-padding path with a tile-unaligned batch.
    q1s, q2s = fwd(state[:5], action[:5], packed)
    jax.block_until_ready((q1s, q2s))
    assert q1s.shape == (5, 1) and q2s.shape == (5, 1)
    assert jnp.allclose(q1s, q1[:5], atol=1e-5)

    print("KERNEL_OK")
</pallas_src>

<mosaic_0001>
module attributes {stable_mosaic.version = 11 : i64} {
  func.func @_qnet_kernel(%arg0: i32, %arg1: memref<8x12xf32, #tpu.memory_space<vmem>>, %arg2: memref<8x4xf32, #tpu.memory_space<vmem>>, %arg3: memref<12x64xbf16, #tpu.memory_space<vmem>>, %arg4: memref<4x64xbf16, #tpu.memory_space<vmem>>, %arg5: memref<1x64xf32, #tpu.memory_space<vmem>>, %arg6: memref<64x64xbf16, #tpu.memory_space<vmem>>, %arg7: memref<1x64xf32, #tpu.memory_space<vmem>>, %arg8: memref<64x2xbf16, #tpu.memory_space<vmem>>, %arg9: memref<1x2xf32, #tpu.memory_space<vmem>>, %arg10: memref<8x2xf32, #tpu.memory_space<vmem>>) attributes {dimension_semantics = [#tpu.dimension_semantics<parallel>], iteration_bounds = array<i64: 1>, scalar_prefetch = 0 : i64, scratch_operands = 0 : i64, tpu.core_type = #tpu.core_type<tc>, window_params = [{transform_indices = @transform_0, window_bounds = array<i64: 8, 12>}, {transform_indices = @transform_1, window_bounds = array<i64: 8, 4>}, {pipeline_mode = #tpu.pipeline_mode<synchronous>, transform_indices = @transform_2, window_bounds = array<i64: 12, 64>}, {pipeline_mode = #tpu.pipeline_mode<synchronous>, transform_indices = @transform_3, window_bounds = array<i64: 4, 64>}, {pipeline_mode = #tpu.pipeline_mode<synchronous>, transform_indices = @transform_4, window_bounds = array<i64: 1, 64>}, {pipeline_mode = #tpu.pipeline_mode<synchronous>, transform_indices = @transform_5, window_bounds = array<i64: 64, 64>}, {pipeline_mode = #tpu.pipeline_mode<synchronous>, transform_indices = @transform_6, window_bounds = array<i64: 1, 64>}, {pipeline_mode = #tpu.pipeline_mode<synchronous>, transform_indices = @transform_7, window_bounds = array<i64: 64, 2>}, {pipeline_mode = #tpu.pipeline_mode<synchronous>, transform_indices = @transform_8, window_bounds = array<i64: 1, 2>}, {transform_indices = @transform_9, window_bounds = array<i64: 8, 2>}]} {
    %c0 = arith.constant 0 : index
    %c0_0 = arith.constant 0 : index
    %0 = vector.load %arg3[%c0, %c0_0] : memref<12x64xbf16, #tpu.memory_space<vmem>>, vector<12x64xbf16>
    %1 = arith.extf %0 : vector<12x64xbf16> to vector<12x64xf32>
    %c0_1 = arith.constant 0 : index
    %c0_2 = arith.constant 0 : index
    %2 = vector.load %arg4[%c0_1, %c0_2] : memref<4x64xbf16, #tpu.memory_space<vmem>>, vector<4x64xbf16>
    %3 = arith.extf %2 : vector<4x64xbf16> to vector<4x64xf32>
    %c0_3 = arith.constant 0 : index
    %c0_4 = arith.constant 0 : index
    %4 = vector.load %arg6[%c0_3, %c0_4] : memref<64x64xbf16, #tpu.memory_space<vmem>>, vector<64x64xbf16>
    %5 = arith.extf %4 : vector<64x64xbf16> to vector<64x64xf32>
    %c0_5 = arith.constant 0 : index
    %c0_6 = arith.constant 0 : index
    %6 = vector.load %arg8[%c0_5, %c0_6] : memref<64x2xbf16, #tpu.memory_space<vmem>>, vector<64x2xbf16>
    %7 = arith.extf %6 : vector<64x2xbf16> to vector<64x2xf32>
    %c0_7 = arith.constant 0 : index
    %c0_8 = arith.constant 0 : index
    %8 = vector.load %arg5[%c0_7, %c0_8] : memref<1x64xf32, #tpu.memory_space<vmem>>, vector<1x64xf32>
    %c0_9 = arith.constant 0 : index
    %c0_10 = arith.constant 0 : index
    %9 = vector.load %arg7[%c0_9, %c0_10] : memref<1x64xf32, #tpu.memory_space<vmem>>, vector<1x64xf32>
    %c0_11 = arith.constant 0 : index
    %c0_12 = arith.constant 0 : index
    %10 = vector.load %arg9[%c0_11, %c0_12] : memref<1x2xf32, #tpu.memory_space<vmem>>, vector<1x2xf32>
    %c0_13 = arith.constant 0 : index
    %c0_14 = arith.constant 0 : index
    %11 = vector.load %arg1[%c0_13, %c0_14] : memref<8x12xf32, #tpu.memory_space<vmem>>, vector<8x12xf32>
    %cst = arith.constant dense<0.000000e+00> : vector<8x64xf32>
    %12 = tpu.matmul %11, %1, %cst {dimension_numbers = #tpu.dot_dimension_numbers<[1], [0], [0], [1], [0, 0, 1, 1], [], []>} : vector<8x12xf32>, vector<12x64xf32>, vector<8x64xf32> -> vector<8x64xf32>
    %c0_15 = arith.constant 0 : index
    %c0_16 = arith.constant 0 : index
    %13 = vector.load %arg2[%c0_15, %c0_16] : memref<8x4xf32, #tpu.memory_space<vmem>>, vector<8x4xf32>
    %cst_17 = arith.constant dense<0.000000e+00> : vector<8x64xf32>
    %14 = tpu.matmul %13, %3, %cst_17 {dimension_numbers = #tpu.dot_dimension_numbers<[1], [0], [0], [1], [0, 0, 1, 1], [], []>} : vector<8x4xf32>, vector<4x64xf32>, vector<8x64xf32> -> vector<8x64xf32>
    %15 = arith.addf %12, %14 : vector<8x64xf32>
    %16 = vector.broadcast %8 : vector<1x64xf32> to vector<8x64xf32>
    %17 = arith.addf %15, %16 : vector<8x64xf32>
    %cst_18 = arith.constant 0.000000e+00 : f32
    %18 = vector.broadcast %cst_18 : f32 to vector<8x64xf32>
    %19 = arith.maximumf %17, %18 : vector<8x64xf32>
    %cst_19 = arith.constant dense<0.000000e+00> : vector<8x64xf32>
    %20 = tpu.matmul %19, %5, %cst_19 {dimension_numbers = #tpu.dot_dimension_numbers<[1], [0], [0], [1], [0, 0, 1, 1], [], []>} : vector<8x64xf32>, vector<64x64xf32>, vector<8x64xf32> -> vector<8x64xf32>
    %21 = vector.broadcast %9 : vector<1x64xf32> to vector<8x64xf32>
    %22 = arith.addf %20, %21 : vector<8x64xf32>
    %cst_20 = arith.constant 0.000000e+00 : f32
    %23 = vector.broadcast %cst_20 : f32 to vector<8x64xf32>
    %24 = arith.maximumf %22, %23 : vector<8x64xf32>
    %cst_21 = arith.constant dense<0.000000e+00> : vector<8x2xf32>
    %25 = tpu.matmul %24, %7, %cst_21 {dimension_numbers = #tpu.dot_dimension_numbers<[1], [0], [0], [1], [0, 0, 1, 1], [], []>} : vector<8x64xf32>, vector<64x2xf32>, vector<8x2xf32> -> vector<8x2xf32>
    %26 = vector.broadcast %10 : vector<1x2xf32> to vector<8x2xf32>
    %27 = arith.addf %25, %26 : vector<8x2xf32>
    %c0_22 = arith.constant 0 : index
    %c0_23 = arith.constant 0 : index
    %28 = vector.load %arg10[%c0_22, %c0_23] : memref<8x2xf32, #tpu.memory_space<vmem>>, vector<8x2xf32>
    tpu.vector_store %arg10[%c0_22, %c0_23], %27 {strides = array<i32>} : memref<8x2xf32, #tpu.memory_space<vmem>>, vector<8x2xf32>,
    return
  }
  func.func @transform_0(%arg0: i32) -> (i32, i32) {
    %c0_i32 = arith.constant 0 : i32
    %c0_i32_0 = arith.constant 0 : i32
    return %arg0, %c0_i32 : i32, i32
  }
  func.func @transform_1(%arg0: i32) -> (i32, i32) {
    %c0_i32 = arith.constant 0 : i32
    %c0_i32_0 = arith.constant 0 : i32
    return %arg0, %c0_i32 : i32, i32
  }
  func.func @transform_2(%arg0: i32) -> (i32, i32) {
    %c0_i32 = arith.constant 0 : i32
    %c0_i32_0 = arith.constant 0 : i32
    %c0_i32_1 = arith.constant 0 : i32
    return %c0_i32, %c0_i32_0 : i32, i32
  }
  func.func @transform_3(%arg0: i32) -> (i32, i32) {
    %c0_i32 = arith.constant 0 : i32
    %c0_i32_0 = arith.constant 0 : i32
    %c0_i32_1 = arith.constant 0 : i32
    return %c0_i32, %c0_i32_0 : i32, i32
  }
  func.func @transform_4(%arg0: i32) -> (i32, i32) {
    %c0_i32 = arith.constant 0 : i32
    %c0_i32_0 = arith.constant 0 : i32
    %c0_i32_1 = arith.constant 0 : i32
    return %c0_i32, %c0_i32_0 : i32, i32
  }
  func.func @transform_5(%arg0: i32) -> (i32, i32) {
    %c0_i32 = arith.constant 0 : i32
    %c0_i32_0 = arith.constant 0 : i32
    %c0_i32_1 = arith.constant 0 : i32
    return %c0_i32, %c0_i32_0 : i32, i32
  }
  func.func @transform_6(%arg0: i32) -> (i32, i32) {
    %c0_i32 = arith.constant 0 : i32
    %c0_i32_0 = arith.constant 0 : i32
    %c0_i32_1 = arith.constant 0 : i32
    return %c0_i32, %c0_i32_0 : i32, i32
  }
  func.func @transform_7(%arg0: i32) -> (i32, i32) {
    %c0_i32 = arith.constant 0 : i32
    %c0_i32_0 = arith.constant 0 : i32
    %c0_i32_1 = arith.constant 0 : i32
    return %c0_i32, %c0_i32_0 : i32, i32
  }
  func.func @transform_8(%arg0: i32) -> (i32, i32) {
    %c0_i32 = arith.constant 0 : i32
    %c0_i32_0 = arith.constant 0 : i32
    %c0_i32_1 = arith.constant 0 : i32
    return %c0_i32, %c0_i32_0 : i32, i32
  }
  func.func @transform_9(%arg0: i32) -> (i32, i32) {
    %c0_i32 = arith.constant 0 : i32
    %c0_i32_0 = arith.constant 0 : i32
    return %arg0, %c0_i32 : i32, i32
  }
}

</mosaic_0001>

<llo_original>
// kernel: qnetwork_forward.1
$region0: #{qnetwork_forward.1}
  #allocation0 [shape = 'u32[]', space=smem, size = 0x4, offset = 0x4, fixed_abs, tag = 'smem constant byte address 0x4 - core index']
  #allocation1 [shape = 'u32[144,128]{1,0:T(1,128)}', space=vmem, size = 0x12000, scoped, tag = 'internal scratch']
  %s0 = inlined_call_operand.vmem [shape: f32[8,12], index: 0, kind: input, shape index: {}]
  %s1 = inlined_call_operand.vmem [shape: f32[8,4], index: 1, kind: input, shape index: {}]
  %s2 = inlined_call_operand.vmem [shape: bf16[12,64], index: 2, kind: input, shape index: {}]
  %s3 = inlined_call_operand.vmem [shape: bf16[4,64], index: 3, kind: input, shape index: {}]
  %s4 = inlined_call_operand.vmem [shape: f32[1,64], index: 4, kind: input, shape index: {}]
  %s5 = inlined_call_operand.vmem [shape: bf16[64,64], index: 5, kind: input, shape index: {}]
  %s6 = inlined_call_operand.vmem [shape: f32[1,64], index: 6, kind: input, shape index: {}]
  %s7 = inlined_call_operand.vmem [shape: bf16[64,2], index: 7, kind: input, shape index: {}]
  %s8 = inlined_call_operand.vmem [shape: f32[1,2], index: 8, kind: input, shape index: {}]
  %s9 = inlined_call_operand.vmem [shape: f32[8,2], index: 9, kind: output, shape index: {}]
  %s10 = sld [smem:[#allocation0]]
  $region46: #{qnetwork_forward.1} parent=0
    _
  %s12 = ssub.s32 1, %s10
  %s13 = scalar_select 0, %s12, %s10
  // Predicated region
  $region2: #{qnetwork_forward.1} parent=0 // pred_check
    _
  $region3: #{qnetwork_forward.1} parent=0 // pred_check_branch
    %15 = sbr.rel (0) target = $region5
  $region4: #{qnetwork_forward.1} parent=0 // pred_region
    _
  $region5: #{qnetwork_forward.1} parent=0 // pred_fallthru
    _
  // Predicated region
  $region6: #{qnetwork_forward.1} parent=0 // pred_check
    _
  $region7: #{qnetwork_forward.1} parent=0 // pred_check_branch
    %17 = sbr.rel (0) target = $region9
  $region8: #{qnetwork_forward.1} parent=0 // pred_region
    _
  $region9: #{qnetwork_forward.1} parent=0 // pred_fallthru
    _
  // Predicated region
  $region10: #{qnetwork_forward.1} parent=0 // pred_check
    _
  $region11: #{qnetwork_forward.1} parent=0 // pred_check_branch
    %19 = sbr.rel (0) target = $region13
  $region12: #{qnetwork_forward.1} parent=0 // pred_region
    _
  $region13: #{qnetwork_forward.1} parent=0 // pred_fallthru
    _
  // Predicated region
  $region14: #{qnetwork_forward.1} parent=0 // pred_check
    _
  $region15: #{qnetwork_forward.1} parent=0 // pred_check_branch
    %21 = sbr.rel (0) target = $region17
  $region16: #{qnetwork_forward.1} parent=0 // pred_region
    _
  $region17: #{qnetwork_forward.1} parent=0 // pred_fallthru
    _
  // Predicated region
  $region18: #{qnetwork_forward.1} parent=0 // pred_check
    _
  $region19: #{qnetwork_forward.1} parent=0 // pred_check_branch
    %23 = sbr.rel (0) target = $region21
  $region20: #{qnetwork_forward.1} parent=0 // pred_region
    _
  $region21: #{qnetwork_forward.1} parent=0 // pred_fallthru
    _
  // Predicated region
  $region22: #{qnetwork_forward.1} parent=0 // pred_check
    _
  $region23: #{qnetwork_forward.1} parent=0 // pred_check_branch
    %25 = sbr.rel (0) target = $region25
  $region24: #{qnetwork_forward.1} parent=0 // pred_region
    _
  $region25: #{qnetwork_forward.1} parent=0 // pred_fallthru
    _
  // Predicated region
  $region26: #{qnetwork_forward.1} parent=0 // pred_check
    _
  $region27: #{qnetwork_forward.1} parent=0 // pred_check_branch
    %27 = sbr.rel (0) target = $region29
  $region28: #{qnetwork_forward.1} parent=0 // pred_region
    _
  $region29: #{qnetwork_forward.1} parent=0 // pred_fallthru
    _
  // Predicated region
  $region30: #{qnetwork_forward.1} parent=0 // pred_check
    _
  $region31: #{qnetwork_forward.1} parent=0 // pred_check_branch
    %29 = sbr.rel (0) target = $region33
  $region32: #{qnetwork_forward.1} parent=0 // pred_region
    _
  $region33: #{qnetwork_forward.1} parent=0 // pred_fallthru
    _
  // Predicated region
  $region34: #{qnetwork_forward.1} parent=0 // pred_check
    _
  $region35: #{qnetwork_forward.1} parent=0 // pred_check_branch
    %31 = sbr.rel (0) target = $region37
  $region36: #{qnetwork_forward.1} parent=0 // pred_region
    _
  $region37: #{qnetwork_forward.1} parent=0 // pred_fallthru
    _
  %v32 = vld [vmem:[%s2] sm:$0xf]
  %v33 = vld [vmem:[%s2 + $0x4] sm:$0x3]
  %v34 = vunpack.c.l.bf16 %v32
  %v35 = vunpack.c.l.bf16 %v33
  %v36 = vld [vmem:[%s3] sm:$0x3]
  %v37 = vunpack.c.l.bf16 %v36
  %v38 = vld [vmem:[%s5] sm:$0xf]
  %v39 = vld [vmem:[%s5 + $0x4] sm:$0xf]
  %v40 = vld [vmem:[%s5 + $0x8] sm:$0xf]
  %v41 = vld [vmem:[%s5 + $0xc] sm:$0xf]
  %v42 = vld [vmem:[%s5 + $0x10] sm:$0xf]
  %v43 = vld [vmem:[%s5 + $0x14] sm:$0xf]
  %v44 = vld [vmem:[%s5 + $0x18] sm:$0xf]
  %v45 = vld [vmem:[%s5 + $0x1c] sm:$0xf]
  %v46 = vunpack.c.l.bf16 %v38
  %v47 = vunpack.c.l.bf16 %v39
  %v48 = vunpack.c.l.bf16 %v40
  %v49 = vunpack.c.l.bf16 %v41
  %v50 = vunpack.c.l.bf16 %v42
  %v51 = vunpack.c.l.bf16 %v43
  %v52 = vunpack.c.l.bf16 %v44
  %v53 = vunpack.c.l.bf16 %v45
  %v54 = vld [vmem:[%s7] sm:$0xf]
  %v55 = vld [vmem:[%s7 + $0x4] sm:$0xf]
  %v56 = vld [vmem:[%s7 + $0x8] sm:$0xf]
  %v57 = vld [vmem:[%s7 + $0xc] sm:$0xf]
  %v58 = vld [vmem:[%s7 + $0x10] sm:$0xf]
  %v59 = vld [vmem:[%s7 + $0x14] sm:$0xf]
  %v60 = vld [vmem:[%s7 + $0x18] sm:$0xf]
  %v61 = vld [vmem:[%s7 + $0x1c] sm:$0xf]
  %v62 = vunpack.c.l.bf16 %v54
  %v63 = vunpack.c.l.bf16 %v55
  %v64 = vunpack.c.l.bf16 %v56
  %v65 = vunpack.c.l.bf16 %v57
  %v66 = vunpack.c.l.bf16 %v58
  %v67 = vunpack.c.l.bf16 %v59
  %v68 = vunpack.c.l.bf16 %v60
  %v69 = vunpack.c.l.bf16 %v61
  %v70 = vld [vmem:[%s4] sm:$0x1]
  %v71 = vld [vmem:[%s6] sm:$0x1]
  %v72 = vld [vmem:[%s8] sm:$0x1]
  %v73 = vld [vmem:[%s0] sm:$0xff]
  %v74 = vld [vmem:[%s1] sm:$0xff]
  %vm75 = vcmask 31744
  %v77 = vsel %vm75, %v74, 0
  %vm79 = vcmask 1043456
  %v81 = vsel %vm79, %v37, 0
  %83 = vmatprep.subr.mxu0 0.0
  %84 = vmatpush1.msra.mxu0 %v81
  %85 = vmatprep.subr.mxu0 0.0
  %86 = vmatpush1.msra.mxu0 0.0
  %87 = vmatprep.subr.mxu0 0.0
  %88 = vmatpush1.msra.mxu0 0.0
  %89 = vmatprep.subr.mxu0 0.0
  %90 = vmatpush1.msra.mxu0 0.0
  %91 = vmatprep.subr.mxu0 0.0
  %92 = vmatpush1.msra.mxu0 0.0
  %93 = vmatprep.subr.mxu0 0.0
  %94 = vmatpush1.msra.mxu0 0.0
  %95 = vmatprep.subr.mxu0 0.0
  %96 = vmatpush1.msra.mxu0 0.0
  %97 = vmatprep.subr.mxu0 0.0
  %98 = vmatpush1.msra.mxu0 0.0
  %99 = vmatprep.subr.mxu0 0.0
  %100 = vmatpush1.msra.mxu0 0.0
  %101 = vmatprep.subr.mxu0 0.0
  %102 = vmatpush1.msra.mxu0 0.0
  %103 = vmatprep.subr.mxu0 0.0
  %104 = vmatpush1.msra.mxu0 0.0
  %105 = vmatprep.subr.mxu0 0.0
  %106 = vmatpush1.msra.mxu0 0.0
  %107 = vmatprep.subr.mxu0 0.0
  %108 = vmatpush1.msra.mxu0 0.0
  %109 = vmatprep.subr.mxu0 0.0
  %110 = vmatpush1.msra.mxu0 0.0
  %111 = vmatprep.subr.mxu0 0.0
  %112 = vmatpush1.msra.mxu0 0.0
  %113 = vmatprep.subr.mxu0 0.0
  %114 = vmatpush1.msra.mxu0 0.0
  %115 = vmatprep.subr.mxu0 0.0
  %116 = vmatpush1.msra.mxu0 0.0
  %117 = vmatprep.subr.mxu0 0.0
  %118 = vmatpush1.msra.mxu0 0.0
  %119 = vmatprep.subr.mxu0 0.0
  %120 = vmatpush1.msra.mxu0 0.0
  %121 = vmatprep.subr.mxu0 0.0
  %122 = vmatpush1.msra.mxu0 0.0
  %123 = vmatprep.subr.mxu0 0.0
  %124 = vmatpush1.msra.mxu0 0.0
  %125 = vmatprep.subr.mxu0 0.0
  %126 = vmatpush1.msra.mxu0 0.0
  %127 = vmatprep.subr.mxu0 0.0
  %128 = vmatpush1.msra.mxu0 0.0
  %129 = vmatprep.subr.mxu0 0.0
  %130 = vmatpush1.msra.mxu0 0.0
  %131 = vmatprep.subr.mxu0 0.0
  %132 = vmatpush1.msra.mxu0 0.0
  %133 = vmatprep.subr.mxu0 0.0
  %134 = vmatpush1.msra.mxu0 0.0
  %135 = vmatprep.subr.mxu0 0.0
  %136 = vmatpush1.msra.mxu0 0.0
  %137 = vmatprep.subr.mxu0 0.0
  %138 = vmatpush1.msra.mxu0 0.0
  %139 = vmatprep.subr.mxu0 0.0
  %140 = vmatpush1.msra.mxu0 0.0
  %141 = vmatprep.subr.mxu0 0.0
  %142 = vmatpush1.msra.mxu0 0.0
  %143 = vmatprep.subr.mxu0 0.0
  %144 = vmatpush1.msra.mxu0 0.0
  %145 = vmatprep.subr.mxu0 0.0
  %146 = vmatpush1.msra.mxu0 0.0
  %147 = vmatprep.mubr.f32.mxu0 0.0
  %148 = vmatmul.mubr.f32.gmra.mrb[0].mxu0 %v77
  %v149 = vpop.f32.mrb[0].mxu0
  %v150 = vadd.f32 0.0, %v149
  %v151 = vpop.f32.mrb[0].mxu0
  %152 = vdwg.mxu0
  %vm153 = vcmask 97280
  %v155 = vsel %vm153, %v73, 0
  %v158 = vsel %vm79, %v35, 0
  %160 = vmatprep.subr.mxu0 0.0
  %161 = vmatpush1.msra.mxu0 %v34
  %162 = vmatprep.subr.mxu0 0.0
  %163 = vmatpush1.msra.mxu0 %v158
  %164 = vmatprep.subr.mxu0 0.0
  %165 = vmatpush1.msra.mxu0 0.0
  %166 = vmatprep.subr.mxu0 0.0
  %167 = vmatpush1.msra.mxu0 0.0
  %168 = vmatprep.subr.mxu0 0.0
  %169 = vmatpush1.msra.mxu0 0.0
  %170 = vmatprep.subr.mxu0 0.0
  %171 = vmatpush1.msra.mxu0 0.0
  %172 = vmatprep.subr.mxu0 0.0
  %173 = vmatpush1.msra.mxu0 0.0
  %174 = vmatprep.subr.mxu0 0.0
  %175 = vmatpush1.msra.mxu0 0.0
  %176 = vmatprep.subr.mxu0 0.0
  %177 = vmatpush1.msra.mxu0 0.0
  %178 = vmatprep.subr.mxu0 0.0
  %179 = vmatpush1.msra.mxu0 0.0
  %180 = vmatprep.subr.mxu0 0.0
  %181 = vmatpush1.msra.mxu0 0.0
  %182 = vmatprep.subr.mxu0 0.0
  %183 = vmatpush1.msra.mxu0 0.0
  %184 = vmatprep.subr.mxu0 0.0
  %185 = vmatpush1.msra.mxu0 0.0
  %186 = vmatprep.subr.mxu0 0.0
  %187 = vmatpush1.msra.mxu0 0.0
  %188 = vmatprep.subr.mxu0 0.0
  %189 = vmatpush1.msra.mxu0 0.0
  %190 = vmatprep.subr.mxu0 0.0
  %191 = vmatpush1.msra.mxu0 0.0
  %192 = vmatprep.subr.mxu0 0.0
  %193 = vmatpush1.msra.mxu0 0.0
  %194 = vmatprep.subr.mxu0 0.0
  %195 = vmatpush1.msra.mxu0 0.0
  %196 = vmatprep.subr.mxu0 0.0
  %197 = vmatpush1.msra.mxu0 0.0
  %198 = vmatprep.subr.mxu0 0.0
  %199 = vmatpush1.msra.mxu0 0.0
  %200 = vmatprep.subr.mxu0 0.0
  %201 = vmatpush1.msra.mxu0 0.0
  %202 = vmatprep.subr.mxu0 0.0
  %203 = vmatpush1.msra.mxu0 0.0
  %204 = vmatprep.subr.mxu0 0.0
  %205 = vmatpush1.msra.mxu0 0.0
  %206 = vmatprep.subr.mxu0 0.0
  %207 = vmatpush1.msra.mxu0 0.0
  %208 = vmatprep.subr.mxu0 0.0
  %209 = vmatpush1.msra.mxu0 0.0
  %210 = vmatprep.subr.mxu0 0.0
  %211 = vmatpush1.msra.mxu0 0.0
  %212 = vmatprep.subr.mxu0 0.0
  %213 = vmatpush1.msra.mxu0 0.0
  %214 = vmatprep.subr.mxu0 0.0
  %215 = vmatpush1.msra.mxu0 0.0
  %216 = vmatprep.subr.mxu0 0.0
  %217 = vmatpush1.msra.mxu0 0.0
  %218 = vmatprep.subr.mxu0 0.0
  %219 = vmatpush1.msra.mxu0 0.0
  %220 = vmatprep.subr.mxu0 0.0
  %221 = vmatpush1.msra.mxu0 0.0
  %222 = vmatprep.subr.mxu0 0.0
  %223 = vmatpush1.msra.mxu0 0.0
  %224 = vmatprep.mubr.f32.mxu0 0.0
  %225 = vmatmul.mubr.f32.gmra.mrb[0].mxu0 %v155
  %v226 = vpop.f32.mrb[0].mxu0
  %v227 = vadd.f32 %v150, %v226
  %v228 = vpop.f32.mrb[0].mxu0
  %229 = vdwg.mxu0
  %v231 = vlaneseq
  %v232 = vshrl.u32 %v231, 7
  %v233 = vsub.s32 0, %v232
  %v234 = vrot.slane %v70, %v233
  %v236 = vadd.f32 %v227, %v234
  %v237 = vmax.f32 %v236, 0.0
  %v239 = vlaneseq
  %v240 = vshrl.u32 %v239, 7
  %v241 = vsub.s32 0, %v240
  %v242 = vrot.slane %v71, %v241
  %vm244 = vcmask 523264
  %v246 = vsel %vm244, %v237, 0
  %248 = vmatprep.subr.mxu0 0.0
  %249 = vmatpush1.msra.mxu0 %v46
  %250 = vmatprep.subr.mxu0 0.0
  %251 = vmatpush1.msra.mxu0 %v47
  %252 = vmatprep.subr.mxu0 0.0
  %253 = vmatpush1.msra.mxu0 %v48
  %254 = vmatprep.subr.mxu0 0.0
  %255 = vmatpush1.msra.mxu0 %v49
  %256 = vmatprep.subr.mxu0 0.0
  %257 = vmatpush1.msra.mxu0 %v50
  %258 = vmatprep.subr.mxu0 0.0
  %259 = vmatpush1.msra.mxu0 %v51
  %260 = vmatprep.subr.mxu0 0.0
  %261 = vmatpush1.msra.mxu0 %v52
  %262 = vmatprep.subr.mxu0 0.0
  %263 = vmatpush1.msra.mxu0 %v53
  %264 = vmatprep.subr.mxu0 0.0
  %265 = vmatpush1.msra.mxu0 0.0
  %266 = vmatprep.subr.mxu0 0.0
  %267 = vmatpush1.msra.mxu0 0.0
  %268 = vmatprep.subr.mxu0 0.0
  %269 = vmatpush1.msra.mxu0 0.0
  %270 = vmatprep.subr.mxu0 0.0
  %271 = vmatpush1.msra.mxu0 0.0
  %272 = vmatprep.subr.mxu0 0.0
  %273 = vmatpush1.msra.mxu0 0.0
  %274 = vmatprep.subr.mxu0 0.0
  %275 = vmatpush1.msra.mxu0 0.0
  %276 = vmatprep.subr.mxu0 0.0
  %277 = vmatpush1.msra.mxu0 0.0
  %278 = vmatprep.subr.mxu0 0.0
  %279 = vmatpush1.msra.mxu0 0.0
  %280 = vmatprep.subr.mxu0 0.0
  %281 = vmatpush1.msra.mxu0 0.0
  %282 = vmatprep.subr.mxu0 0.0
  %283 = vmatpush1.msra.mxu0 0.0
  %284 = vmatprep.subr.mxu0 0.0
  %285 = vmatpush1.msra.mxu0 0.0
  %286 = vmatprep.subr.mxu0 0.0
  %287 = vmatpush1.msra.mxu0 0.0
  %288 = vmatprep.subr.mxu0 0.0
  %289 = vmatpush1.msra.mxu0 0.0
  %290 = vmatprep.subr.mxu0 0.0
  %291 = vmatpush1.msra.mxu0 0.0
  %292 = vmatprep.subr.mxu0 0.0
  %293 = vmatpush1.msra.mxu0 0.0
  %294 = vmatprep.subr.mxu0 0.0
  %295 = vmatpush1.msra.mxu0 0.0
  %296 = vmatprep.subr.mxu0 0.0
  %297 = vmatpush1.msra.mxu0 0.0
  %298 = vmatprep.subr.mxu0 0.0
  %299 = vmatpush1.msra.mxu0 0.0
  %300 = vmatprep.subr.mxu0 0.0
  %301 = vmatpush1.msra.mxu0 0.0
  %302 = vmatprep.subr.mxu0 0.0
  %303 = vmatpush1.msra.mxu0 0.0
  %304 = vmatprep.subr.mxu0 0.0
  %305 = vmatpush1.msra.mxu0 0.0
  %306 = vmatprep.subr.mxu0 0.0
  %307 = vmatpush1.msra.mxu0 0.0
  %308 = vmatprep.subr.mxu0 0.0
  %309 = vmatpush1.msra.mxu0 0.0
  %310 = vmatprep.subr.mxu0 0.0
  %311 = vmatpush1.msra.mxu0 0.0
  %312 = vmatprep.mubr.f32.mxu0 0.0
  %313 = vmatmul.mubr.f32.gmra.mrb[0].mxu0 %v246
  %v314 = vpop.f32.mrb[0].mxu0
  %v315 = vadd.f32 %v242, %v314
  %v316 = vpop.f32.mrb[0].mxu0
  %317 = vdwg.mxu0
  %v318 = vmax.f32 %v315, 0.0
  %v320 = vlaneseq
  %v321 = vshrl.u32 %v320, 7
  %v322 = vsub.s32 0, %v321
  %v323 = vrot.slane %v72, %v322
  %v326 = vsel %vm244, %v318, 0
  %328 = vmatprep.subr.mxu0 0.0
  %329 = vmatpush1.msra.mxu0 %v62
  %330 = vmatprep.subr.mxu0 0.0
  %331 = vmatpush1.msra.mxu0 %v63
  %332 = vmatprep.subr.mxu0 0.0
  %333 = vmatpush1.msra.mxu0 %v64
  %334 = vmatprep.subr.mxu0 0.0
  %335 = vmatpush1.msra.mxu0 %v65
  %336 = vmatprep.subr.mxu0 0.0
  %337 = vmatpush1.msra.mxu0 %v66
  %338 = vmatprep.subr.mxu0 0.0
  %339 = vmatpush1.msra.mxu0 %v67
  %340 = vmatprep.subr.mxu0 0.0
  %341 = vmatpush1.msra.mxu0 %v68
  %342 = vmatprep.subr.mxu0 0.0
  %343 = vmatpush1.msra.mxu0 %v69
  %344 = vmatprep.subr.mxu0 0.0
  %345 = vmatpush1.msra.mxu0 0.0
  %346 = vmatprep.subr.mxu0 0.0
  %347 = vmatpush1.msra.mxu0 0.0
  %348 = vmatprep.subr.mxu0 0.0
  %349 = vmatpush1.msra.mxu0 0.0
  %350 = vmatprep.subr.mxu0 0.0
  %351 = vmatpush1.msra.mxu0 0.0
  %352 = vmatprep.subr.mxu0 0.0
  %353 = vmatpush1.msra.mxu0 0.0
  %354 = vmatprep.subr.mxu0 0.0
  %355 = vmatpush1.msra.mxu0 0.0
  %356 = vmatprep.subr.mxu0 0.0
  %357 = vmatpush1.msra.mxu0 0.0
  %358 = vmatprep.subr.mxu0 0.0
  %359 = vmatpush1.msra.mxu0 0.0
  %360 = vmatprep.subr.mxu0 0.0
  %361 = vmatpush1.msra.mxu0 0.0
  %362 = vmatprep.subr.mxu0 0.0
  %363 = vmatpush1.msra.mxu0 0.0
  %364 = vmatprep.subr.mxu0 0.0
  %365 = vmatpush1.msra.mxu0 0.0
  %366 = vmatprep.subr.mxu0 0.0
  %367 = vmatpush1.msra.mxu0 0.0
  %368 = vmatprep.subr.mxu0 0.0
  %369 = vmatpush1.msra.mxu0 0.0
  %370 = vmatprep.subr.mxu0 0.0
  %371 = vmatpush1.msra.mxu0 0.0
  %372 = vmatprep.subr.mxu0 0.0
  %373 = vmatpush1.msra.mxu0 0.0
  %374 = vmatprep.subr.mxu0 0.0
  %375 = vmatpush1.msra.mxu0 0.0
  %376 = vmatprep.subr.mxu0 0.0
  %377 = vmatpush1.msra.mxu0 0.0
  %378 = vmatprep.subr.mxu0 0.0
  %379 = vmatpush1.msra.mxu0 0.0
  %380 = vmatprep.subr.mxu0 0.0
  %381 = vmatpush1.msra.mxu0 0.0
  %382 = vmatprep.subr.mxu0 0.0
  %383 = vmatpush1.msra.mxu0 0.0
  %384 = vmatprep.subr.mxu0 0.0
  %385 = vmatpush1.msra.mxu0 0.0
  %386 = vmatprep.subr.mxu0 0.0
  %387 = vmatpush1.msra.mxu0 0.0
  %388 = vmatprep.subr.mxu0 0.0
  %389 = vmatpush1.msra.mxu0 0.0
  %390 = vmatprep.subr.mxu0 0.0
  %391 = vmatpush1.msra.mxu0 0.0
  %392 = vmatprep.mubr.f32.mxu0 0.0
  %393 = vmatmul.mubr.f32.gmra.mrb[0].mxu0 %v326
  %v394 = vpop.f32.mrb[0].mxu0
  %v395 = vadd.f32 %v323, %v394
  %v396 = vpop.f32.mrb[0].mxu0
  %397 = vdwg.mxu0
  %vm398 = vcmask 15360
  %399 = vst.msk [vmem:[%s9] sm:$0xff] %vm398, %v395
  // Predicated region
  $region38: #{qnetwork_forward.1} parent=0 // pred_check
    _
  $region39: #{qnetwork_forward.1} parent=0 // pred_check_branch
    %401 = sbr.rel (0) target = $region41
  $region40: #{qnetwork_forward.1} parent=0 // pred_region
    _
  $region41: #{qnetwork_forward.1} parent=0 // pred_fallthru
    _
  // Predicated region
  $region42: #{qnetwork_forward.1} parent=0 // pred_check
    _
  $region43: #{qnetwork_forward.1} parent=0 // pred_check_branch
    %403 = sbr.rel (0) target = $region45
  $region44: #{qnetwork_forward.1} parent=0 // pred_region
    _
  $region45: #{qnetwork_forward.1} parent=0 // pred_fallthru
    _

</llo_original>
